<compile_context>
chip_gen: v6e
topology: v6e:2x2x1
jax: 0.10.0
libtpu: 0.0.40
codegen_flags: <defaults>
</compile_context>

<pallas_src>
import math
from functools import partial

import jax
import jax.numpy as jnp
from jax import lax
from jax.experimental import pallas as pl
from jax.experimental.pallas import tpu as pltpu


_VMEM_LIMIT = 48 * 1024 * 1024    # scoped limit: leaves headroom on v7x (64 MiB phys)
_VMEM_BUDGET = 36 * 1024 * 1024   # planning budget for weight-residency decisions

_TM_PREFS = (512, 256, 128, 64, 32, 16)   # never 8: bf16 output min-tile is (16,128)


def _pick_tile(dim, prefs):
    """Largest preferred tile that evenly divides `dim`, else the full dim."""
    for p in prefs:
        if dim >= p and dim % p == 0:
            return p
    return dim


def _gelu(x):
    # TODO(synk): HF BERT uses erf-GELU; tanh approximation used here (EUP-friendly).
    return 0.5 * x * (1.0 + jnp.tanh(0.7978845608028654 * (x + 0.044715 * x * x * x)))


# ----------------------------- dense kernels -------------------------------

def _dense_resident_kernel(x_ref, w_ref, b_ref, o_ref, *, activation):
    """out = act(x @ w + b); the whole (K, N) weight stays VMEM-resident."""
    y = jnp.dot(x_ref[...], w_ref[...], preferred_element_type=jnp.float32)
    y = y + b_ref[...].astype(jnp.float32)
    if activation == "gelu":
        y = _gelu(y)
    o_ref[...] = y.astype(o_ref.dtype)


def _dense_ktiled_kernel(x_ref, w_ref, b_ref, o_ref, acc_ref, *, activation):
    """Fallback for weights too large to keep resident: K-tiled accumulation."""
    k = pl.program_id(2)

    @pl.when(k == 0)
    def _():
        acc_ref[...] = jnp.zeros_like(acc_ref)

    acc_ref[...] += jnp.dot(x_ref[...], w_ref[...],
                            preferred_element_type=jnp.float32)

    @pl.when(k == pl.num_programs(2) - 1)
    def _():
        y = acc_ref[...] + b_ref[...].astype(jnp.float32)
        if activation == "gelu":
            y = _gelu(y)
        o_ref[...] = y.astype(o_ref.dtype)


def dense(x, w, b, activation=None, out_dtype=jnp.bfloat16):
    """y = act(x @ w + b). x: (M, K) bf16, w: (K, N) bf16, b: (N,) f32."""
    M, K = x.shape
    N = w.shape[1]

    def resident_bytes(tm):
        # weight (counted double-buffered, conservative) + double-buffered x/out
        # blocks + f32 epilogue temporaries.
        return (2 * K * N * 2) + (2 * tm * K * 2) + (2 * tm * N * 2) + (2 * tm * N * 4)

    tm = _pick_tile(M, _TM_PREFS)
    while tm > 16 and resident_bytes(tm) > _VMEM_BUDGET and M % (tm // 2) == 0:
        tm //= 2

    if resident_bytes(tm) <= _VMEM_BUDGET:
        # Weight-resident path: grid over M only, weight fetched once
        # (constant index_map), no K accumulation rounds.
        # TODO(synk): on v7x, fp8 weight storage would halve weight traffic /
        # double MXU throughput on the FFN matmuls.
        return pl.pallas_call(
            partial(_dense_resident_kernel, activation=activation),
            out_shape=jax.ShapeDtypeStruct((M, N), out_dtype),
            grid=(M // tm,),
            in_specs=[
                pl.BlockSpec((tm, K), lambda i: (i, 0)),
                pl.BlockSpec((K, N), lambda i: (0, 0)),    # resident weight
                pl.BlockSpec((1, N), lambda i: (0, 0)),
            ],
            out_specs=pl.BlockSpec((tm, N), lambda i: (i, 0)),
            compiler_params=pltpu.CompilerParams(
                dimension_semantics=("parallel",),
                vmem_limit_bytes=_VMEM_LIMIT),
        )(x, w, b.reshape(1, N))

    # Fallback: K/N-tiled with f32 VMEM accumulator.
    tn = _pick_tile(N, (1024, 512, 256, 128))
    tk = _pick_tile(K, (512, 256, 128))
    return pl.pallas_call(
        partial(_dense_ktiled_kernel, activation=activation),
        out_shape=jax.ShapeDtypeStruct((M, N), out_dtype),
        grid=(M // tm, N // tn, K // tk),
        in_specs=[
            pl.BlockSpec((tm, tk), lambda i, j, k: (i, k)),
            pl.BlockSpec((tk, tn), lambda i, j, k: (k, j)),
            pl.BlockSpec((1, tn), lambda i, j, k: (0, j)),
        ],
        out_specs=pl.BlockSpec((tm, tn), lambda i, j, k: (i, j)),
        scratch_shapes=[pltpu.VMEM((tm, tn), jnp.float32)],
        compiler_params=pltpu.CompilerParams(
            dimension_semantics=("parallel", "parallel", "arbitrary"),
            vmem_limit_bytes=_VMEM_LIMIT),
    )(x, w, b.reshape(1, N))


def _dense_res_ln_resident_kernel(x_ref, w_ref, b_ref, r_ref, g_ref, bb_ref,
                                  o_ref, *, eps):
    """out = LayerNorm(x @ w + b + residual); weight VMEM-resident."""
    y = jnp.dot(x_ref[...], w_ref[...], preferred_element_type=jnp.float32)
    y = y + b_ref[...].astype(jnp.float32) + r_ref[...].astype(jnp.float32)
    mean = jnp.mean(y, axis=-1, keepdims=True)
    yc = y - mean
    var = jnp.mean(yc * yc, axis=-1, keepdims=True)
    o_ref[...] = (yc * lax.rsqrt(var + eps) * g_ref[...].astype(jnp.float32)
                  + bb_ref[...].astype(jnp.float32)).astype(o_ref.dtype)


def _dense_res_ln_ktiled_kernel(x_ref, w_ref, b_ref, r_ref, g_ref, bb_ref,
                                o_ref, acc_ref, *, eps):
    """Fallback: K-tiled matmul with fused residual + LayerNorm epilogue."""
    k = pl.program_id(1)

    @pl.when(k == 0)
    def _():
        acc_ref[...] = jnp.zeros_like(acc_ref)

    acc_ref[...] += jnp.dot(x_ref[...], w_ref[...],
                            preferred_element_type=jnp.float32)

    @pl.when(k == pl.num_programs(1) - 1)
    def _():
        y = (acc_ref[...] + b_ref[...].astype(jnp.float32)
             + r_ref[...].astype(jnp.float32))
        mean = jnp.mean(y, axis=-1, keepdims=True)
        yc = y - mean
        var = jnp.mean(yc * yc, axis=-1, keepdims=True)
        o_ref[...] = (yc * lax.rsqrt(var + eps) * g_ref[...].astype(jnp.float32)
                      + bb_ref[...].astype(jnp.float32)).astype(o_ref.dtype)


def dense_residual_layernorm(x, w, b, res, gamma, beta, eps=1e-12,
                             out_dtype=jnp.bfloat16):
    """LayerNorm(x @ w + b + res). N kept whole (LN needs the full row)."""
    M, K = x.shape
    N = w.shape[1]

    def resident_bytes(tm):
        return (2 * K * N * 2) + (2 * tm * K * 2) + 2 * (2 * tm * N * 2) + (2 * tm * N * 4)

    tm = _pick_tile(M, _TM_PREFS)
    while tm > 16 and resident_bytes(tm) > _VMEM_BUDGET and M % (tm // 2) == 0:
        tm //= 2

    if resident_bytes(tm) <= _VMEM_BUDGET:
        return pl.pallas_call(
            partial(_dense_res_ln_resident_kernel, eps=eps),
            out_shape=jax.ShapeDtypeStruct((M, N), out_dtype),
            grid=(M // tm,),
            in_specs=[
                pl.BlockSpec((tm, K), lambda i: (i, 0)),
                pl.BlockSpec((K, N), lambda i: (0, 0)),    # resident weight
                pl.BlockSpec((1, N), lambda i: (0, 0)),
                pl.BlockSpec((tm, N), lambda i: (i, 0)),   # residual
                pl.BlockSpec((1, N), lambda i: (0, 0)),
                pl.BlockSpec((1, N), lambda i: (0, 0)),
            ],
            out_specs=pl.BlockSpec((tm, N), lambda i: (i, 0)),
            compiler_params=pltpu.CompilerParams(
                dimension_semantics=("parallel",),
                vmem_limit_bytes=_VMEM_LIMIT),
        )(x, w, b.reshape(1, N), res, gamma.reshape(1, N), beta.reshape(1, N))

    tk = _pick_tile(K, (512, 256, 128))
    return pl.pallas_call(
        partial(_dense_res_ln_ktiled_kernel, eps=eps),
        out_shape=jax.ShapeDtypeStruct((M, N), out_dtype),
        grid=(M // tm, K // tk),
        in_specs=[
            pl.BlockSpec((tm, tk), lambda i, k: (i, k)),
            pl.BlockSpec((tk, N), lambda i, k: (k, 0)),
            pl.BlockSpec((1, N), lambda i, k: (0, 0)),
            pl.BlockSpec((tm, N), lambda i, k: (i, 0)),
            pl.BlockSpec((1, N), lambda i, k: (0, 0)),
            pl.BlockSpec((1, N), lambda i, k: (0, 0)),
        ],
        out_specs=pl.BlockSpec((tm, N), lambda i, k: (i, 0)),
        scratch_shapes=[pltpu.VMEM((tm, N), jnp.float32)],
        compiler_params=pltpu.CompilerParams(
            dimension_semantics=("parallel", "arbitrary"),
            vmem_limit_bytes=_VMEM_LIMIT),
    )(x, w, b.reshape(1, N), res, gamma.reshape(1, N), beta.reshape(1, N))


# ---------------------- embedding add + LayerNorm kernel -------------------

def _emb_ln_kernel(tok_ref, pos_ref, typ_ref, g_ref, b_ref, o_ref, *, eps):
    """LayerNorm(tok + pos + type): the embedding adds are fused with the LN."""
    x = (tok_ref[...].astype(jnp.float32) + pos_ref[...].astype(jnp.float32)
         + typ_ref[...].astype(jnp.float32))
    mean = jnp.mean(x, axis=-1, keepdims=True)
    xc = x - mean
    var = jnp.mean(xc * xc, axis=-1, keepdims=True)
    o_ref[...] = (xc * lax.rsqrt(var + eps) * g_ref[...].astype(jnp.float32)
                  + b_ref[...].astype(jnp.float32)).astype(o_ref.dtype)


def embed_layernorm(tok, pos, typ, gamma, beta, B, S, eps=1e-12,
                    out_dtype=jnp.bfloat16):
    """tok: (B*S, D) f32, pos: (S, D) f32, typ: (1, D) f32 -> (B*S, D) bf16."""
    D = tok.shape[1]
    return pl.pallas_call(
        partial(_emb_ln_kernel, eps=eps),
        out_shape=jax.ShapeDtypeStruct((B * S, D), out_dtype),
        grid=(B,),
        in_specs=[
            pl.BlockSpec((S, D), lambda b: (b, 0)),   # rows of batch b
            pl.BlockSpec((S, D), lambda b: (0, 0)),   # positional table (resident)
            pl.BlockSpec((1, D), lambda b: (0, 0)),
            pl.BlockSpec((1, D), lambda b: (0, 0)),
            pl.BlockSpec((1, D), lambda b: (0, 0)),
        ],
        out_specs=pl.BlockSpec((S, D), lambda b: (b, 0)),
        compiler_params=pltpu.CompilerParams(
            dimension_semantics=("parallel",),
            vmem_limit_bytes=_VMEM_LIMIT),
    )(tok, pos, typ, gamma.reshape(1, D), beta.reshape(1, D))


# ----------------------------- attention kernel ----------------------------

def _attn_head_kernel(q_ref, k_ref, v_ref, bias_ref, o_ref, *, scale):
    """Masked self-attention for one (batch, head): (S, Dh) in, (S, Dh) out.

    q/k/v blocks are full in their last two dims (lane-aligned); the padding
    mask arrives as a precomputed additive bias shared across layers/heads;
    the softmax scale is folded into q (S*Dh multiplies, not S*S).
    """
    q = (q_ref[...].astype(jnp.float32) * scale).astype(jnp.bfloat16)   # (S, Dh)
    k = k_ref[...]                                                       # (S, Dh)
    v = v_ref[...]                                                       # (S, Dh)

    # TODO(synk): for long S, tile the key axis with an online softmax (flash
    # pattern); on v6e/v7x processing 2 heads per step would better fill the
    # 256-wide MXU (contraction dim here is only Dh).
    s = lax.dot_general(q, k, (((1,), (1,)), ((), ())),
                        preferred_element_type=jnp.float32)              # (S, S)
    s = s + bias_ref[...]                         # (1, S) additive pad-key mask
    s = s - jnp.max(s, axis=-1, keepdims=True)
    p = jnp.exp(s)
    p = p * pl.reciprocal(jnp.sum(p, axis=-1, keepdims=True), approx=True)
    o_ref[...] = jnp.dot(p.astype(jnp.bfloat16), v,
                         preferred_element_type=jnp.float32).astype(o_ref.dtype)


def attention(qkv_hm, bias, num_heads, head_dim):
    """qkv_hm: (B, 3, H, S, Dh) bf16; bias: (B, 1, S) f32 -> (B, H, S, Dh) bf16."""
    B, _, H, S, Dh = qkv_hm.shape
    scale = 1.0 / math.sqrt(head_dim)
    return pl.pallas_call(
        partial(_attn_head_kernel, scale=scale),
        out_shape=jax.ShapeDtypeStruct((B, H, S, Dh), jnp.bfloat16),
        grid=(B, H),
        in_specs=[
            pl.BlockSpec((None, None, None, S, Dh), lambda b, h: (b, 0, h, 0, 0)),  # q
            pl.BlockSpec((None, None, None, S, Dh), lambda b, h: (b, 1, h, 0, 0)),  # k
            pl.BlockSpec((None, None, None, S, Dh), lambda b, h: (b, 2, h, 0, 0)),  # v
            pl.BlockSpec((None, 1, S), lambda b, h: (b, 0, 0)),                     # bias
        ],
        out_specs=pl.BlockSpec((None, None, S, Dh), lambda b, h: (b, h, 0, 0)),
        compiler_params=pltpu.CompilerParams(
            dimension_semantics=("parallel", "parallel"),
            vmem_limit_bytes=_VMEM_LIMIT),
    )(qkv_hm, qkv_hm, qkv_hm, bias)


# -------------------------- parameters & forward ---------------------------

def init_params(key, vocab, D, F, L, max_pos=64):
    # TODO(synk): AutoModel.from_pretrained checkpoint load has no Pallas
    # equivalent; weights are synthesized deterministically instead.
    keys = jax.random.split(key, 4 + L)

    def bf16_w(k, shape, scale=0.02):
        return (scale * jax.random.normal(k, shape, dtype=jnp.float32)).astype(jnp.bfloat16)

    params = {
        "tok_emb": 0.02 * jax.random.normal(keys[0], (vocab, D), jnp.float32),
        "pos_emb": 0.02 * jax.random.normal(keys[1], (max_pos, D), jnp.float32),
        "type_emb": 0.02 * jax.random.normal(keys[2], (2, D), jnp.float32),
        "emb_ln_g": jnp.ones((D,), jnp.float32),
        "emb_ln_b": jnp.zeros((D,), jnp.float32),
        "layers": [],
    }
    for l in range(L):
        lk = jax.random.split(keys[4 + l], 4)
        params["layers"].append({
            # fused Q|K|V projection: one (D, 3D) matmul per layer
            "w_qkv": bf16_w(lk[0], (D, 3 * D)), "b_qkv": jnp.zeros((3 * D,), jnp.float32),
            "wo": bf16_w(lk[1], (D, D)), "bo": jnp.zeros((D,), jnp.float32),
            "ln1_g": jnp.ones((D,), jnp.float32), "ln1_b": jnp.zeros((D,), jnp.float32),
            "w1": bf16_w(lk[2], (D, F)), "b1": jnp.zeros((F,), jnp.float32),
            "w2": bf16_w(lk[3], (F, D)), "b2": jnp.zeros((D,), jnp.float32),
            "ln2_g": jnp.ones((D,), jnp.float32), "ln2_b": jnp.zeros((D,), jnp.float32),
        })
    return params


def bert_cls_forward(params, inputs, num_heads, pad_idx=0):
    """Mirrors Bert_CLS.forward: returns {'output_memory': last_hidden[:, 0, :]}."""
    B, S = inputs.shape
    D = params["tok_emb"].shape[1]
    assert D % num_heads == 0, "hidden size must be divisible by num_heads"
    assert S <= params["pos_emb"].shape[0], "sequence exceeds positional table"
    Dh = D // num_heads

    # src_nopad_mask = inputs != pad_idx -> additive attention bias, built once
    # and reused across every layer and head.
    attn_bias = jnp.where(inputs != pad_idx, 0.0, -1e9).astype(jnp.float32)
    attn_bias = attn_bias.reshape(B, 1, S)

    # Embeddings: token gather stays in XLA; pos/type adds + LayerNorm fused
    # into one Pallas kernel.
    # TODO(synk): embedding-table gather (jnp.take) has no clean Pallas tile form.
    tok = jnp.take(params["tok_emb"], inputs, axis=0).reshape(B * S, D)
    h2d = embed_layernorm(tok, params["pos_emb"][:S],
                          params["type_emb"][0].reshape(1, D),
                          params["emb_ln_g"], params["emb_ln_b"], B, S)
    # TODO(synk): dropout omitted (inference-mode identity).

    for layer in params["layers"]:
        # Fused QKV projection -> (B*S, 3D), then head-major relayout so each
        # attention grid step sees full-dim (S, Dh) blocks (layout plumbing).
        qkv = dense(h2d, layer["w_qkv"], layer["b_qkv"])
        qkv_hm = qkv.reshape(B, S, 3, num_heads, Dh).transpose(0, 2, 3, 1, 4)
        ctx = attention(qkv_hm, attn_bias, num_heads, Dh)       # (B, H, S, Dh)
        ctx2d = ctx.transpose(0, 2, 1, 3).reshape(B * S, D)
        # Attention output projection fused with residual-add + LayerNorm.
        h2d = dense_residual_layernorm(ctx2d, layer["wo"], layer["bo"], h2d,
                                       layer["ln1_g"], layer["ln1_b"])
        # FFN: matmul + bias + GELU fused; second matmul fused with res + LN.
        ffn = dense(h2d, layer["w1"], layer["b1"], activation="gelu")
        h2d = dense_residual_layernorm(ffn, layer["w2"], layer["b2"], h2d,
                                       layer["ln2_g"], layer["ln2_b"])

    hidden = h2d.reshape(B, S, D)                    # hidden_states[-1]
    memory = hidden[:, 0, :].astype(jnp.float32)     # CLS token
    return {"output_memory": memory}


# ---------------------------- pure-JAX reference ----------------------------

def bert_cls_reference(params, inputs, num_heads, pad_idx=0):
    """f32 reference mirroring the kernel math, for numerical validation."""
    B, S = inputs.shape
    D = params["tok_emb"].shape[1]
    Dh = D // num_heads
    keep = inputs != pad_idx

    def ln(x, g, b, eps=1e-12):
        mu = jnp.mean(x, -1, keepdims=True)
        xc = x - mu
        var = jnp.mean(xc * xc, -1, keepdims=True)
        return xc * lax.rsqrt(var + eps) * g + b

    h = jnp.take(params["tok_emb"], inputs, axis=0)
    h = h + params["pos_emb"][:S][None, :, :] + params["type_emb"][0][None, None, :]
    h = ln(h, params["emb_ln_g"], params["emb_ln_b"])

    for layer in params["layers"]:
        qkv = h @ layer["w_qkv"].astype(jnp.float32) + layer["b_qkv"]
        q, k, v = jnp.split(qkv, 3, axis=-1)

        def split_heads(x):
            return x.reshape(B, S, num_heads, Dh).transpose(0, 2, 1, 3)

        qh, kh, vh = split_heads(q), split_heads(k), split_heads(v)
        s = jnp.einsum("bhqd,bhkd->bhqk", qh, kh) / math.sqrt(Dh)
        s = jnp.where(keep[:, None, None, :], s, -1e9)
        p = jax.nn.softmax(s, axis=-1)
        ctx = jnp.einsum("bhqk,bhkd->bhqd", p, vh)
        ctx = ctx.transpose(0, 2, 1, 3).reshape(B, S, D)
        attn = ctx @ layer["wo"].astype(jnp.float32) + layer["bo"]
        h = ln(attn + h, layer["ln1_g"], layer["ln1_b"])
        f = _gelu(h @ layer["w1"].astype(jnp.float32) + layer["b1"])
        f = f @ layer["w2"].astype(jnp.float32) + layer["b2"]
        h = ln(f + h, layer["ln2_g"], layer["ln2_b"])
    return h[:, 0, :]


# ---------------------------------- main -----------------------------------

if __name__ == "__main__":
    B, S, D, H, F, L, VOCAB = 2, 8, 32, 2, 64, 2, 50
    PAD_IDX = 0

    key = jax.random.PRNGKey(0)
    pkey, ikey = jax.random.split(key)
    params = init_params(pkey, VOCAB, D, F, L)

    # Deterministic token ids; pad the tail of the second sequence.
    inputs = jax.random.randint(ikey, (B, S), 1, VOCAB, dtype=jnp.int32)
    inputs = inputs.at[1, 6:].set(PAD_IDX)

    out = bert_cls_forward(params, inputs, num_heads=H, pad_idx=PAD_IDX)
    mem = jax.block_until_ready(out["output_memory"])
    assert mem.shape == (B, D) and mem.dtype == jnp.float32
    assert bool(jnp.all(jnp.isfinite(mem)))

    # Validate against the pure-JAX f32 reference (bf16 activation tolerance).
    ref = bert_cls_reference(params, inputs, num_heads=H, pad_idx=PAD_IDX)
    max_err = float(jnp.max(jnp.abs(mem - ref)))
    assert max_err < 0.1, f"kernel/reference mismatch: max_err={max_err}"

    print("KERNEL_OK")
</pallas_src>

<mosaic_0001>
module attributes {stable_mosaic.version = 11 : i64} {
  func.func @_emb_ln_kernel(%arg0: i32, %arg1: memref<8x32xf32, #tpu.memory_space<vmem>>, %arg2: memref<8x32xf32, #tpu.memory_space<vmem>>, %arg3: memref<1x32xf32, #tpu.memory_space<vmem>>, %arg4: memref<1x32xf32, #tpu.memory_space<vmem>>, %arg5: memref<1x32xf32, #tpu.memory_space<vmem>>, %arg6: memref<8x32xbf16, #tpu.memory_space<vmem>>) attributes {dimension_semantics = [#tpu.dimension_semantics<parallel>], iteration_bounds = array<i64: 2>, scalar_prefetch = 0 : i64, scratch_operands = 0 : i64, tpu.core_type = #tpu.core_type<tc>, window_params = [{transform_indices = @transform_0, window_bounds = array<i64: 8, 32>}, {pipeline_mode = #tpu.pipeline_mode<synchronous>, transform_indices = @transform_1, window_bounds = array<i64: 8, 32>}, {pipeline_mode = #tpu.pipeline_mode<synchronous>, transform_indices = @transform_2, window_bounds = array<i64: 1, 32>}, {pipeline_mode = #tpu.pipeline_mode<synchronous>, transform_indices = @transform_3, window_bounds = array<i64: 1, 32>}, {pipeline_mode = #tpu.pipeline_mode<synchronous>, transform_indices = @transform_4, window_bounds = array<i64: 1, 32>}, {transform_indices = @transform_5, window_bounds = array<i64: 8, 32>}]} {
    %c0 = arith.constant 0 : index
    %c0_0 = arith.constant 0 : index
    %0 = vector.load %arg1[%c0, %c0_0] : memref<8x32xf32, #tpu.memory_space<vmem>>, vector<8x32xf32>
    %c0_1 = arith.constant 0 : index
    %c0_2 = arith.constant 0 : index
    %1 = vector.load %arg2[%c0_1, %c0_2] : memref<8x32xf32, #tpu.memory_space<vmem>>, vector<8x32xf32>
    %2 = arith.addf %0, %1 : vector<8x32xf32>
    %c0_3 = arith.constant 0 : index
    %c0_4 = arith.constant 0 : index
    %3 = vector.load %arg3[%c0_3, %c0_4] : memref<1x32xf32, #tpu.memory_space<vmem>>, vector<1x32xf32>
    %4 = vector.broadcast %3 : vector<1x32xf32> to vector<8x32xf32>
    %5 = arith.addf %2, %4 : vector<8x32xf32>
    %cst = arith.constant dense<0.000000e+00> : vector<8xf32>
    %6 = vector.multi_reduction <add>, %5, %cst [1] : vector<8x32xf32> to vector<8xf32>
    %7 = vector.shape_cast %6 : vector<8xf32> to vector<8x1xf32>
    %cst_5 = arith.constant 3.200000e+01 : f32
    %8 = vector.broadcast %cst_5 : f32 to vector<8x1xf32>
    %9 = arith.divf %7, %8 : vector<8x1xf32>
    %10 = vector.broadcast %9 : vector<8x1xf32> to vector<8x32xf32>
    %11 = arith.subf %5, %10 : vector<8x32xf32>
    %12 = arith.mulf %11, %11 : vector<8x32xf32>
    %cst_6 = arith.constant dense<0.000000e+00> : vector<8xf32>
    %13 = vector.multi_reduction <add>, %12, %cst_6 [1] : vector<8x32xf32> to vector<8xf32>
    %14 = vector.shape_cast %13 : vector<8xf32> to vector<8x1xf32>
    %cst_7 = arith.constant 3.200000e+01 : f32
    %15 = vector.broadcast %cst_7 : f32 to vector<8x1xf32>
    %16 = arith.divf %14, %15 : vector<8x1xf32>
    %cst_8 = arith.constant 9.99999996E-13 : f32
    %17 = vector.broadcast %cst_8 : f32 to vector<8x1xf32>
    %18 = arith.addf %16, %17 : vector<8x1xf32>
    %19 = math.rsqrt %18 : vector<8x1xf32>
    %20 = vector.broadcast %19 : vector<8x1xf32> to vector<8x32xf32>
    %21 = arith.mulf %11, %20 : vector<8x32xf32>
    %c0_9 = arith.constant 0 : index
    %c0_10 = arith.constant 0 : index
    %22 = vector.load %arg4[%c0_9, %c0_10] : memref<1x32xf32, #tpu.memory_space<vmem>>, vector<1x32xf32>
    %23 = vector.broadcast %22 : vector<1x32xf32> to vector<8x32xf32>
    %24 = arith.mulf %21, %23 : vector<8x32xf32>
    %c0_11 = arith.constant 0 : index
    %c0_12 = arith.constant 0 : index
    %25 = vector.load %arg5[%c0_11, %c0_12] : memref<1x32xf32, #tpu.memory_space<vmem>>, vector<1x32xf32>
    %26 = vector.broadcast %25 : vector<1x32xf32> to vector<8x32xf32>
    %27 = arith.addf %24, %26 : vector<8x32xf32>
    %28 = arith.truncf %27 : vector<8x32xf32> to vector<8x32xbf16>
    %c0_13 = arith.constant 0 : index
    %c0_14 = arith.constant 0 : index
    %29 = vector.load %arg6[%c0_13, %c0_14] : memref<8x32xbf16, #tpu.memory_space<vmem>>, vector<8x32xbf16>
    tpu.vector_store %arg6[%c0_13, %c0_14], %28 {strides = array<i32>} : memref<8x32xbf16, #tpu.memory_space<vmem>>, vector<8x32xbf16>,
    return
  }
  func.func @transform_0(%arg0: i32) -> (i32, i32) {
    %c0_i32 = arith.constant 0 : i32
    %c0_i32_0 = arith.constant 0 : i32
    return %arg0, %c0_i32 : i32, i32
  }
  func.func @transform_1(%arg0: i32) -> (i32, i32) {
    %c0_i32 = arith.constant 0 : i32
    %c0_i32_0 = arith.constant 0 : i32
    %c0_i32_1 = arith.constant 0 : i32
    return %c0_i32, %c0_i32_0 : i32, i32
  }
  func.func @transform_2(%arg0: i32) -> (i32, i32) {
    %c0_i32 = arith.constant 0 : i32
    %c0_i32_0 = arith.constant 0 : i32
    %c0_i32_1 = arith.constant 0 : i32
    return %c0_i32, %c0_i32_0 : i32, i32
  }
  func.func @transform_3(%arg0: i32) -> (i32, i32) {
    %c0_i32 = arith.constant 0 : i32
    %c0_i32_0 = arith.constant 0 : i32
    %c0_i32_1 = arith.constant 0 : i32
    return %c0_i32, %c0_i32_0 : i32, i32
  }
  func.func @transform_4(%arg0: i32) -> (i32, i32) {
    %c0_i32 = arith.constant 0 : i32
    %c0_i32_0 = arith.constant 0 : i32
    %c0_i32_1 = arith.constant 0 : i32
    return %c0_i32, %c0_i32_0 : i32, i32
  }
  func.func @transform_5(%arg0: i32) -> (i32, i32) {
    %c0_i32 = arith.constant 0 : i32
    %c0_i32_0 = arith.constant 0 : i32
    return %arg0, %c0_i32 : i32, i32
  }
}

</mosaic_0001>

<llo_original>
// kernel: tpu_custom_call.1
$region0: #{tpu_custom_call.1}
  #allocation0 [shape = 'u32[]', space=smem, size = 0x4, offset = 0x4, fixed_abs, tag = 'smem constant byte address 0x4 - core index']
  #allocation1 [shape = 'u32[144,128]{1,0:T(1,128)}', space=vmem, size = 0x12000, scoped, tag = 'internal scratch']
  %s0 = inlined_call_operand.hbm [shape: f32[16,32], index: 0, kind: input, shape index: {}]
  %s1 = inlined_call_operand.hbm [shape: f32[8,32], index: 1, kind: input, shape index: {}]
  %s2 = inlined_call_operand.vmem [shape: f32[1,32], index: 2, kind: input, shape index: {}]
  %s3 = inlined_call_operand.vmem [shape: f32[1,32], index: 3, kind: input, shape index: {}]
  %s4 = inlined_call_operand.vmem [shape: f32[1,32], index: 4, kind: input, shape index: {}]
  %s5 = inlined_call_operand.hbm [shape: bf16[16,32], index: 5, kind: output, shape index: {}]
  %s6 = sld [smem:[#allocation0]]
  $region61: #{tpu_custom_call.1} parent=0
    _
  %s8 = ssub.s32 1, %s6
  %s9 = scalar_select 0, %s8, %s6
  $region1: #{tpu_custom_call.1} parent=0
    #allocation2 [shape = 'u8[8192]{0}', space=vmem, size = 0x2000, scoped, tag = 'input window, operand 0']
    #allocation3 [shape = 's32[2]{0}', space=sflag, size = 0x8, scoped, tag = 'scoped memory for tpu_custom_call.1']
    #allocation4 [shape = 's32[2]{0}', space=sflag, size = 0x8, scoped, tag = 'scoped memory for tpu_custom_call.1']
    #allocation5 [shape = 'u8[4096]{0}', space=vmem, size = 0x1000, scoped, tag = 'input window, operand 1, single buffered']
    #allocation6 [shape = 's32[1]{0}', space=sflag, size = 0x4, scoped, tag = 'scoped memory for tpu_custom_call.1']
    #allocation7 [shape = 'u8[4096]{0}', space=vmem, size = 0x1000, scoped, tag = 'output window, operand 0']
    %10 = vsyncpa [#allocation3], 0
    %s11 = scalar_lea.sflag [#allocation3], 1
    %12 = vsyncpa %s11, 0
    %13 = vsyncpa [#allocation6], 0
    %14 = vsyncpa [#allocation4], 0
    %s15 = scalar_lea.sflag [#allocation4], 1
    %16 = vsyncpa %s15, 0
    loop: start=0, step=1, limit=4
    $region2: #{tpu_custom_call.1} parent=1 // loop_pre_header
      _
    $region3: #{tpu_custom_call.1} parent=1 // loop_header
      %s18 = sphi 0, %s22
      %p19 = scmp.ge.s32.totalorder %s18, 4
      %s28 = sphi 0, %s30
      %s31 = sphi 0, %s28
      %s32 = sphi 0, %s31
      %s48 = sphi 0, %s32
      %s52 = sphi 0, %s52
      %s54 = sphi 0, %s52
      %s55 = sphi 0, %s54
      %s69 = sphi 0, %s55
      %s73 = sphi 0, %s73
      %s75 = sphi 0, %s73
      %s76 = sphi 0, %s75
      %s90 = sphi 0, %s76
      %s94 = sphi 0, %s94
      %s96 = sphi 0, %s94
      %s97 = sphi 0, %s96
      %s111 = sphi 0, %s97
      %s115 = sphi 0, %s115
      %s117 = sphi 0, %s115
      %s118 = sphi 0, %s117
      %s132 = sphi 0, %s118
      %s138 = sphi 0, %s140
      %s141 = sphi 0, %s138
      %s142 = sphi 0, %s141
      %s158 = sphi 0, %s142
    $region4: #{tpu_custom_call.1} parent=1 // loop_header_branch
      %21 = sbr.rel (%p19) target = $region8
    $region5: #{tpu_custom_call.1} parent=1 // loop_body
      %s23 = ssub.s32 %s18, 1
      %s24 = ssub.s32 %s18, 2
      %s25 = sadd.s32 %s18, 1
      %s26 = ssub.s32 %s18, %s25
      %p27 = scmp.eq.s32.totalorder %s26, 0
      %s29 = sadd.s32 %s28, 1
      %s30 = scalar_select %p27, %s28, %s29
      %p33 = pneg %p27
      %p34 = scmp.eq.s32.totalorder %s18, 1
      %p35 = por %p33, %p34
      %p36 = scmp.ne.s32.totalorder %s28, %s31
      %p37 = scmp.eq.s32.totalorder %s18, 0
      %p38 = por %p36, %p37
      %p39 = scmp.ne.s32.totalorder %s28, %s31
      %p40 = scmp.eq.s32.totalorder %s23, 1
      %p41 = por %p39, %p40
      %p42 = scmp.ne.s32.totalorder %s31, %s32
      %p43 = scmp.eq.s32.totalorder %s23, 0
      %p44 = por %p42, %p43
      %p45 = scmp.ne.s32.totalorder %s31, %s32
      %p46 = scmp.eq.s32.totalorder %s24, 1
      %p47 = por %p45, %p46
      %p49 = scmp.ne.s32.totalorder %s32, %s48
      %p50 = scmp.eq.s32.totalorder %s24, 0
      %p51 = por %p49, %p50
      %s53 = sadd.s32 %s52, 1
      %p56 = scmp.eq.s32.totalorder %s18, 1
      %p57 = scmp.ne.s32.totalorder %s52, %s54
      %p58 = scmp.eq.s32.totalorder %s18, 0
      %p59 = por %p57, %p58
      %p60 = scmp.ne.s32.totalorder %s52, %s54
      %p61 = scmp.eq.s32.totalorder %s23, 1
      %p62 = por %p60, %p61
      %p63 = scmp.ne.s32.totalorder %s54, %s55
      %p64 = scmp.eq.s32.totalorder %s23, 0
      %p65 = por %p63, %p64
      %p66 = scmp.ne.s32.totalorder %s54, %s55
      %p67 = scmp.eq.s32.totalorder %s24, 1
      %p68 = por %p66, %p67
      %p70 = scmp.ne.s32.totalorder %s55, %s69
      %p71 = scmp.eq.s32.totalorder %s24, 0
      %p72 = por %p70, %p71
      %s74 = sadd.s32 %s73, 1
      %p77 = scmp.eq.s32.totalorder %s18, 1
      %p78 = scmp.ne.s32.totalorder %s73, %s75
      %p79 = scmp.eq.s32.totalorder %s18, 0
      %p80 = por %p78, %p79
      %p81 = scmp.ne.s32.totalorder %s73, %s75
      %p82 = scmp.eq.s32.totalorder %s23, 1
      %p83 = por %p81, %p82
      %p84 = scmp.ne.s32.totalorder %s75, %s76
      %p85 = scmp.eq.s32.totalorder %s23, 0
      %p86 = por %p84, %p85
      %p87 = scmp.ne.s32.totalorder %s75, %s76
      %p88 = scmp.eq.s32.totalorder %s24, 1
      %p89 = por %p87, %p88
      %p91 = scmp.ne.s32.totalorder %s76, %s90
      %p92 = scmp.eq.s32.totalorder %s24, 0
      %p93 = por %p91, %p92
      %s95 = sadd.s32 %s94, 1
      %p98 = scmp.eq.s32.totalorder %s18, 1
      %p99 = scmp.ne.s32.totalorder %s94, %s96
      %p100 = scmp.eq.s32.totalorder %s18, 0
      %p101 = por %p99, %p100
      %p102 = scmp.ne.s32.totalorder %s94, %s96
      %p103 = scmp.eq.s32.totalorder %s23, 1
      %p104 = por %p102, %p103
      %p105 = scmp.ne.s32.totalorder %s96, %s97
      %p106 = scmp.eq.s32.totalorder %s23, 0
      %p107 = por %p105, %p106
      %p108 = scmp.ne.s32.totalorder %s96, %s97
      %p109 = scmp.eq.s32.totalorder %s24, 1
      %p110 = por %p108, %p109
      %p112 = scmp.ne.s32.totalorder %s97, %s111
      %p113 = scmp.eq.s32.totalorder %s24, 0
      %p114 = por %p112, %p113
      %s116 = sadd.s32 %s115, 1
      %p119 = scmp.eq.s32.totalorder %s18, 1
      %p120 = scmp.ne.s32.totalorder %s115, %s117
      %p121 = scmp.eq.s32.totalorder %s18, 0
      %p122 = por %p120, %p121
      %p123 = scmp.ne.s32.totalorder %s115, %s117
      %p124 = scmp.eq.s32.totalorder %s23, 1
      %p125 = por %p123, %p124
      %p126 = scmp.ne.s32.totalorder %s117, %s118
      %p127 = scmp.eq.s32.totalorder %s23, 0
      %p128 = por %p126, %p127
      %p129 = scmp.ne.s32.totalorder %s117, %s118
      %p130 = scmp.eq.s32.totalorder %s24, 1
      %p131 = por %p129, %p130
      %p133 = scmp.ne.s32.totalorder %s118, %s132
      %p134 = scmp.eq.s32.totalorder %s24, 0
      %p135 = por %p133, %p134
      %s136 = ssub.s32 %s18, %s25
      %p137 = scmp.eq.s32.totalorder %s136, 0
      %s139 = sadd.s32 %s138, 1
      %s140 = scalar_select %p137, %s138, %s139
      %p143 = pneg %p137
      %p144 = scmp.eq.s32.totalorder %s18, 1
      %p145 = por %p143, %p144
      %p146 = scmp.ne.s32.totalorder %s138, %s141
      %p147 = scmp.eq.s32.totalorder %s18, 0
      %p148 = por %p146, %p147
      %p149 = scmp.ne.s32.totalorder %s138, %s141
      %p150 = scmp.eq.s32.totalorder %s23, 1
      %p151 = por %p149, %p150
      %p152 = scmp.ne.s32.totalorder %s141, %s142
      %p153 = scmp.eq.s32.totalorder %s23, 0
      %p154 = por %p152, %p153
      %p155 = scmp.ne.s32.totalorder %s141, %s142
      %p156 = scmp.eq.s32.totalorder %s24, 1
      %p157 = por %p155, %p156
      %p159 = scmp.ne.s32.totalorder %s142, %s158
      %p160 = scmp.eq.s32.totalorder %s24, 0
      %p161 = por %p159, %p160
      %p162 = scmp.le.s32.totalorder 1, %s18
      %p163 = scmp.lt.s32.totalorder %s18, 3
      %p164 = pnand %p162, %p163
      %p165 = pneg %p164
      // Predicated region
      $region9: #{tpu_custom_call.1} parent=5 // pred_check
        _
      $region10: #{tpu_custom_call.1} parent=5 // pred_check_branch
        %167 = sbr.rel (%p164) target = $region12
      $region11: #{tpu_custom_call.1} parent=5 // pred_region
        %s168 = ssub.s32 %s18, 1
        // Predicated region
        $region13: #{tpu_custom_call.1} parent=11 // pred_check
          %p169 = pneg %p65
        $region14: #{tpu_custom_call.1} parent=11 // pred_check_branch
          %171 = sbr.rel (%p169) target = $region16
        $region15: #{tpu_custom_call.1} parent=11 // pred_region
          %s173 = ssub.s32 128, 128
          %174 = vsyncadd [#allocation6], %s173
          %s176 = sshll.u32 [#allocation5], 4
          %s177 = int_to_ptr.vmem [resolvable:$true] %s176
          %179 = dma.hbm_to_vmem [thread:$0]  %s1, 128, %s177, [#allocation6]
        $region16: #{tpu_custom_call.1} parent=11 // pred_fallthru
          _
        // Predicated region
        $region17: #{tpu_custom_call.1} parent=11 // pred_check
          %p180 = pneg %p86
        $region18: #{tpu_custom_call.1} parent=11 // pred_check_branch
          %182 = sbr.rel (%p180) target = $region20
        $region19: #{tpu_custom_call.1} parent=11 // pred_region
          _
        $region20: #{tpu_custom_call.1} parent=11 // pred_fallthru
          _
        // Predicated region
        $region21: #{tpu_custom_call.1} parent=11 // pred_check
          %p183 = pneg %p107
        $region22: #{tpu_custom_call.1} parent=11 // pred_check_branch
          %185 = sbr.rel (%p183) target = $region24
        $region23: #{tpu_custom_call.1} parent=11 // pred_region
          _
        $region24: #{tpu_custom_call.1} parent=11 // pred_fallthru
          _
        // Predicated region
        $region25: #{tpu_custom_call.1} parent=11 // pred_check
          %p186 = pneg %p128
        $region26: #{tpu_custom_call.1} parent=11 // pred_check_branch
          %188 = sbr.rel (%p186) target = $region28
        $region27: #{tpu_custom_call.1} parent=11 // pred_region
          _
        $region28: #{tpu_custom_call.1} parent=11 // pred_fallthru
          _
      $region12: #{tpu_custom_call.1} parent=5 // pred_fallthru
        _
      %p189 = scmp.lt.s32.totalorder %s18, 2
      // Predicated region
      $region29: #{tpu_custom_call.1} parent=5 // pred_check
        %p190 = pneg %p189
      $region30: #{tpu_custom_call.1} parent=5 // pred_check_branch
        %192 = sbr.rel (%p190) target = $region32
      $region31: #{tpu_custom_call.1} parent=5 // pred_region
        // Predicated region
        $region33: #{tpu_custom_call.1} parent=31 // pred_check
          %p193 = pneg %p38
        $region34: #{tpu_custom_call.1} parent=31 // pred_check_branch
          %195 = sbr.rel (%p193) target = $region36
        $region35: #{tpu_custom_call.1} parent=31 // pred_region
          %s196 = sand.u32 %s28, 1
          %s197 = scalar_lea.sflag [#allocation3], %s196
          %s198 = sand.u32 %s28, 1
          %s199 = smul.addr %s198, 8
          %s200 = scalar_lea.vmem [#allocation2], %s199
          %s202 = ssub.s32 128, 128
          %203 = vsyncadd %s197, %s202
          %s204 = smul.addr %s18, 128
          %s205 = scalar_lea.hbm %s0, %s204
          %s207 = sshll.u32 %s200, 4
          %s208 = int_to_ptr.vmem [resolvable:$true] %s207
          %210 = dma.hbm_to_vmem [thread:$0]  %s205, 128, %s208, %s197
        $region36: #{tpu_custom_call.1} parent=31 // pred_fallthru
          _
      $region32: #{tpu_custom_call.1} parent=5 // pred_fallthru
        _
      %p211 = scmp.le.s32.totalorder 1, %s18
      %p212 = scmp.lt.s32.totalorder %s18, 3
      %p213 = pnand %p211, %p212
      %p214 = pneg %p213
      // Predicated region
      $region37: #{tpu_custom_call.1} parent=5 // pred_check
        _
      $region38: #{tpu_custom_call.1} parent=5 // pred_check_branch
        %216 = sbr.rel (%p213) target = $region40
      $region39: #{tpu_custom_call.1} parent=5 // pred_region
        %s217 = ssub.s32 %s18, 1
        %s218 = sand.u32 %s31, 1
        %s219 = scalar_lea.sflag [#allocation3], %s218
        %s220 = sand.u32 %s31, 1
        %s221 = smul.addr %s220, 8
        %s222 = scalar_lea.vmem [#allocation2], %s221
        // Predicated region
        $region41: #{tpu_custom_call.1} parent=39 // pred_check
          %p223 = pneg %p44
        $region42: #{tpu_custom_call.1} parent=39 // pred_check_branch
          %225 = sbr.rel (%p223) target = $region44
        $region43: #{tpu_custom_call.1} parent=39 // pred_region
          %226 = dma.done %s219, 128
        $region44: #{tpu_custom_call.1} parent=39 // pred_fallthru
          _
        // Predicated region
        $region45: #{tpu_custom_call.1} parent=39 // pred_check
          %p227 = pneg %p65
        $region46: #{tpu_custom_call.1} parent=39 // pred_check_branch
          %229 = sbr.rel (%p227) target = $region48
        $region47: #{tpu_custom_call.1} parent=39 // pred_region
          %230 = dma.done [#allocation6], 128
        $region48: #{tpu_custom_call.1} parent=39 // pred_fallthru
          _
        %s231 = sand.u32 %s31, 1
        %s232 = scalar_lea.sflag [#allocation3], %s231
        %s233 = sand.u32 %s31, 1
        %s234 = smul.addr %s233, 8
        %s235 = scalar_lea.vmem [#allocation2], %s234
        %p236 = pneg %p44
        %p237 = pneg %p41
        %p238 = pneg %p65
        %p239 = pneg %p62
        %p240 = pneg %p86
        %p241 = pneg %p83
        %p242 = pneg %p107
        %p243 = pneg %p104
        %p244 = pneg %p128
        %p245 = pneg %p125
        %p246 = pneg %p154
        %p247 = pneg %p151
        %s248 = sand.u32 %s141, 1
        %s249 = scalar_lea.sflag [#allocation4], %s248
        %s250 = sand.u32 %s141, 1
        %s251 = smul.addr %s250, 4
        %s252 = scalar_lea.vmem [#allocation7], %s251
        %v253 = vld [vmem:[%s222] sm:$0xff]
        %v254 = vld [vmem:[#allocation5] sm:$0xff]
        %v255 = vadd.f32 %v253, %v254
        %v256 = vld [vmem:[%s2] sm:$0x1]
        %v258 = vlaneseq
        %v259 = vshrl.u32 %v258, 7
        %v260 = vsub.s32 0, %v259
        %v261 = vrot.slane %v256, %v260
        %v263 = vadd.f32 %v255, %v261
        %vm264 = vcmask 261120
        %v265 = vsel %vm264, %v263, 0.0
        %266 = vadd.xlane.f32.xlu0 %v265
        %v267 = vpop.xlane.xlu0 %266
        %v268 = vrcp.pop 32.0
        %v269 = vmul.f32 %v267, %v268
        %v270 = vsub.f32 %v263, %v269
        %v271 = vmul.f32 %v270, %v270
        %v272 = vsel %vm264, %v271, 0.0
        %273 = vadd.xlane.f32.xlu0 %v272
        %v274 = vpop.xlane.xlu0 %273
        %v275 = vmul.f32 %v274, %v268
        %v276 = vadd.f32 %v275, 1e-12
        %v277 = vrsqrt.pop %v276
        %v278 = vmul.f32 %v270, %v277
        %v279 = vld [vmem:[%s3] sm:$0x1]
        %v281 = vlaneseq
        %v282 = vshrl.u32 %v281, 7
        %v283 = vsub.s32 0, %v282
        %v284 = vrot.slane %v279, %v283
        %v286 = vmul.f32 %v278, %v284
        %v287 = vld [vmem:[%s4] sm:$0x1]
        %v289 = vlaneseq
        %v290 = vshrl.u32 %v289, 7
        %v291 = vsub.s32 0, %v290
        %v292 = vrot.slane %v287, %v291
        %v294 = vadd.f32 %v286, %v292
        %v295 = vpack.c.bf16 %v294, %v294
        %vm296 = vcmask 257024
        %297 = vst.msk [vmem:[%s252] sm:$0xf] %vm296, %v295
        %s298 = sand.u32 %s141, 1
        %s299 = scalar_lea.sflag [#allocation4], %s298
        %s300 = sand.u32 %s141, 1
        %s301 = smul.addr %s300, 4
        %s302 = scalar_lea.vmem [#allocation7], %s301
        // Predicated region
        $region49: #{tpu_custom_call.1} parent=39 // pred_check
          %p303 = pneg %p151
        $region50: #{tpu_custom_call.1} parent=39 // pred_check_branch
          %305 = sbr.rel (%p303) target = $region52
        $region51: #{tpu_custom_call.1} parent=39 // pred_region
          %s307 = ssub.s32 64, 64
          %308 = vsyncadd %s299, %s307
          %s309 = smul.addr %s23, 64
          %s310 = scalar_lea.hbm %s5, %s309
          %s312 = sshll.u32 %s302, 4
          %s313 = int_to_ptr.vmem [resolvable:$true] %s312
          %315 = dma.vmem_to_hbm [thread:$0]  %s313, 64, %s310, %s299
        $region52: #{tpu_custom_call.1} parent=39 // pred_fallthru
          _
      $region40: #{tpu_custom_call.1} parent=5 // pred_fallthru
        _
      %p316 = scmp.le.s32.totalorder 2, %s18
      // Predicated region
      $region53: #{tpu_custom_call.1} parent=5 // pred_check
        %p317 = pneg %p316
      $region54: #{tpu_custom_call.1} parent=5 // pred_check_branch
        %319 = sbr.rel (%p317) target = $region56
      $region55: #{tpu_custom_call.1} parent=5 // pred_region
        %s320 = ssub.s32 %s18, 2
        // Predicated region
        $region57: #{tpu_custom_call.1} parent=55 // pred_check
          %p321 = pneg %p157
        $region58: #{tpu_custom_call.1} parent=55 // pred_check_branch
          %323 = sbr.rel (%p321) target = $region60
        $region59: #{tpu_custom_call.1} parent=55 // pred_region
          %s324 = sand.u32 %s142, 1
          %s325 = scalar_lea.sflag [#allocation4], %s324
          %s326 = sand.u32 %s142, 1
          %s327 = smul.addr %s326, 4
          %s328 = scalar_lea.vmem [#allocation7], %s327
          %329 = dma.done %s325, 64
        $region60: #{tpu_custom_call.1} parent=55 // pred_fallthru
          _
      $region56: #{tpu_custom_call.1} parent=5 // pred_fallthru
        _
    $region6: #{tpu_custom_call.1} parent=1 // loop_footer
      %s22 = sadd.s32 1, %s18
    $region7: #{tpu_custom_call.1} parent=1 // loop_footer_branch
      %17 = sbr.rel target = $region3
    $region8: #{tpu_custom_call.1} parent=1 // loop_exit
      _
    %330 = vsyncpa [#allocation3], 1
    %s331 = scalar_lea.sflag [#allocation3], 1
    %332 = vsyncpa %s331, 1
    %333 = vsyncpa [#allocation6], 1
    %334 = vsyncpa [#allocation4], 1
    %s335 = scalar_lea.sflag [#allocation4], 1
    %336 = vsyncpa %s335, 1

</llo_original>
